<compile_context>
chip_gen: v6e
topology: v6e:2x2x1
jax: 0.10.0
libtpu: 0.0.40
codegen_flags: <defaults>
</compile_context>

<pallas_src>
import functools

import jax
import jax.numpy as jnp
from jax.experimental import pallas as pl
from jax.experimental.pallas import tpu as pltpu

_LANE = 128
_SUBLANE = 8
_SMALL_CIN = 16          # stem-layer threshold: pack 9 taps instead of padding Cin to 128


def _round_up(x, m):
    return (x + m - 1) // m * m


def _device_defaults():
    """(preferred Cout tile, default H tile, vmem limit bytes) per TPU generation."""
    try:
        kind = jax.devices()[0].device_kind.lower()
    except Exception:
        kind = ""
    if "v7" in kind:
        # v7x: 256-wide MXU but only 64 MiB VMEM per TensorCore -> keep headroom.
        return 256, 8, 48 * 1024 * 1024
    if "v6" in kind:
        return 256, 16, 64 * 1024 * 1024
    if "v5 lite" in kind or "v5e" in kind or "v5litepod" in kind:
        # v5e: 128-wide MXU, so TC=256 buys nothing; larger TH amortizes grid overhead.
        return 128, 16, 64 * 1024 * 1024
    return 128, 8, 64 * 1024 * 1024


# --------------------------------------------------------------------------------------
# General kernel (Cin padded to a multiple of 128).
# --------------------------------------------------------------------------------------
def _conv_kernel(x_ref, top_ref, bot_ref, w_ref, bias_ref, o_ref, lhs_ref):
    # x_ref:    (1, TH, Wp+2, Cin_p)  bf16  H-strip rows (W conv-halo included)
    # top_ref:  (1, 1, Wp+2, Cin_p)   bf16  row above the strip (zeros at image top)
    # bot_ref:  (1, 1, Wp+2, Cin_p)   bf16  row below the strip (zeros at image bottom)
    # w_ref:    (3, 3*Cin_p, TC)      bf16  per-kh weight slab, kw fused in K, BN scale folded
    # bias_ref: (1, TC)               f32   beta - mean * scale
    # o_ref:    (1, TH, Wp, TC)       bf16
    # lhs_ref:  ((TH+2)*Wp, 3*Cin_p)  bf16  persistent VMEM scratch: kw-fused im2col LHS
    TH = o_ref.shape[1]
    Wp = o_ref.shape[2]
    TC = o_ref.shape[3]
    Cin = x_ref.shape[3]
    K = 3 * Cin
    M = TH * Wp

    # Build the fused LHS once per H-strip; co is the innermost grid axis, so the same
    # strip (and this scratch) is revisited for every Cout block.
    @pl.when(pl.program_id(2) == 0)
    def _build_lhs():
        full = jnp.concatenate([top_ref[0], x_ref[0], bot_ref[0]], axis=0)  # (TH+2,Wp+2,C)
        fused = jnp.concatenate(
            [full[:, 0:Wp, :], full[:, 1:Wp + 1, :], full[:, 2:Wp + 2, :]], axis=-1)
        lhs_ref[...] = fused.reshape((TH + 2) * Wp, K)

    f32 = jnp.float32
    # Output row h, stencil row kh reads fused row (h + kh): three equal M x K matmuls.
    acc = jnp.dot(lhs_ref[0:M, :], w_ref[0], preferred_element_type=f32)
    acc = acc + jnp.dot(lhs_ref[Wp:Wp + M, :], w_ref[1], preferred_element_type=f32)
    acc = acc + jnp.dot(lhs_ref[2 * Wp:2 * Wp + M, :], w_ref[2], preferred_element_type=f32)

    # Fused BN bias + LeakyReLU(0.01) epilogue (scale already folded into the weights).
    y = acc + bias_ref[0]
    y = jnp.where(y > 0, y, f32(0.01) * y)
    o_ref[0] = y.reshape(TH, Wp, TC).astype(o_ref.dtype)


# --------------------------------------------------------------------------------------
# Stem-layer kernel (small Cin): the wrapper pre-packs all 9 taps into K = 9*Cin, so the
# kernel is a single matmul per tile (no channel padding, no halos, no scratch).
# --------------------------------------------------------------------------------------
def _conv_kernel_small_cin(x_ref, w_ref, bias_ref, o_ref):
    # x_ref:    (1, TH, Wp, K)  bf16  pre-packed 9-tap patches, K = 9*Cin
    # w_ref:    (K, TC)         bf16  BN scale folded in
    # bias_ref: (1, TC)         f32
    # o_ref:    (1, TH, Wp, TC) bf16
    TH, Wp, K = x_ref.shape[1], x_ref.shape[2], x_ref.shape[3]
    TC = o_ref.shape[3]
    lhs = x_ref[0].reshape(TH * Wp, K)
    acc = jnp.dot(lhs, w_ref[...], preferred_element_type=jnp.float32)
    y = acc + bias_ref[0]
    y = jnp.where(y > 0, y, jnp.float32(0.01) * y)
    o_ref[0] = y.reshape(TH, Wp, TC).astype(o_ref.dtype)


@functools.partial(jax.jit,
                   static_argnames=("eps", "tile_h", "tile_cout", "vmem_limit"))
def _forward(x_nchw, weight_oihw, gamma, beta, running_mean, running_var,
             eps, tile_h, tile_cout, vmem_limit):
    N, Cin, H, W = x_nchw.shape
    Cout = weight_oihw.shape[0]
    Cout_p = _round_up(Cout, _LANE)
    TC = tile_cout
    TH = tile_h
    H_pad = _round_up(H, TH)
    W_pad = _round_up(W, _SUBLANE)
    n_h = H_pad // TH
    n_co = Cout_p // TC

    # Fold inference BN into the weights (scale) and a per-channel bias.
    scale = gamma.astype(jnp.float32) / jnp.sqrt(running_var.astype(jnp.float32) + eps)
    bias = beta.astype(jnp.float32) - running_mean.astype(jnp.float32) * scale
    bias = jnp.pad(bias, (0, Cout_p - Cout)).reshape(1, Cout_p)
    w_scaled = weight_oihw.astype(jnp.float32) * scale[:, None, None, None]     # OIHW

    x_nhwc = jnp.transpose(x_nchw, (0, 2, 3, 1)).astype(jnp.bfloat16)

    if Cin <= _SMALL_CIN:
        # --- stem-layer path: pack all 9 taps (K = 9*Cin) in the wrapper -------------
        K = 9 * Cin
        xp = jnp.pad(x_nhwc, ((0, 0), (1, 1), (1, 1), (0, 0)))
        patches = jnp.concatenate(
            [xp[:, kh:kh + H, kw:kw + W, :] for kh in range(3) for kw in range(3)],
            axis=-1)                                                  # (N, H, W, 9*Cin)
        patches = jnp.pad(patches, ((0, 0), (0, H_pad - H), (0, W_pad - W), (0, 0)))

        w = jnp.pad(w_scaled, ((0, Cout_p - Cout), (0, 0), (0, 0), (0, 0)))
        w = jnp.transpose(w, (2, 3, 1, 0)).reshape(K, Cout_p).astype(jnp.bfloat16)

        out = pl.pallas_call(
            _conv_kernel_small_cin,
            out_shape=jax.ShapeDtypeStruct((N, H_pad, W_pad, Cout_p), jnp.bfloat16),
            grid_spec=pltpu.PrefetchScalarGridSpec(
                num_scalar_prefetch=0,
                grid=(N, n_h, n_co),
                in_specs=[
                    pl.BlockSpec((1, TH, W_pad, K), lambda n, hs, co: (n, hs, 0, 0)),
                    pl.BlockSpec((K, TC), lambda n, hs, co: (0, co)),
                    pl.BlockSpec((1, TC), lambda n, hs, co: (0, co)),
                ],
                out_specs=pl.BlockSpec((1, TH, W_pad, TC),
                                       lambda n, hs, co: (n, hs, 0, co)),
            ),
            compiler_params=pltpu.CompilerParams(
                dimension_semantics=("parallel", "parallel", "parallel"),
                vmem_limit_bytes=vmem_limit),
        )(patches, w, bias)
    else:
        # --- general path: Cin padded to 128, kw fused in-kernel, LHS cached over co --
        Cin_p = _round_up(Cin, _LANE)
        x = jnp.pad(x_nhwc, ((0, 0),
                             (0, H_pad - H),
                             (1, (W_pad - W) + 1),     # left conv-halo + right halo/align
                             (0, Cin_p - Cin)))        # (N, H_pad, W_pad+2, Cin_p)
        # Row halos per H-strip: row above / below each strip (zeros outside the image).
        zrow = jnp.zeros((N, 1, W_pad + 2, Cin_p), jnp.bfloat16)
        top = jnp.concatenate([zrow, x[:, TH - 1:H_pad - 1:TH]], axis=1)
        bot = jnp.concatenate([x[:, TH:H_pad:TH], zrow], axis=1)

        # Weights: OIHW -> (kh, kw*Cin_p + cin, cout), BN scale folded, bf16.
        w = jnp.pad(w_scaled, ((0, Cout_p - Cout), (0, Cin_p - Cin), (0, 0), (0, 0)))
        w = jnp.transpose(w, (2, 3, 1, 0)).reshape(3, 3 * Cin_p, Cout_p).astype(jnp.bfloat16)

        out = pl.pallas_call(
            _conv_kernel,
            out_shape=jax.ShapeDtypeStruct((N, H_pad, W_pad, Cout_p), jnp.bfloat16),
            grid_spec=pltpu.PrefetchScalarGridSpec(
                num_scalar_prefetch=0,
                # co innermost: x / halo block indices stay constant across the inner loop
                # (one DMA + one im2col per strip); the weight slab streams per co step.
                grid=(N, n_h, n_co),
                in_specs=[
                    pl.BlockSpec((1, TH, W_pad + 2, Cin_p), lambda n, hs, co: (n, hs, 0, 0)),
                    pl.BlockSpec((1, 1, W_pad + 2, Cin_p), lambda n, hs, co: (n, hs, 0, 0)),
                    pl.BlockSpec((1, 1, W_pad + 2, Cin_p), lambda n, hs, co: (n, hs, 0, 0)),
                    pl.BlockSpec((3, 3 * Cin_p, TC), lambda n, hs, co: (0, 0, co)),
                    pl.BlockSpec((1, TC), lambda n, hs, co: (0, co)),
                ],
                out_specs=pl.BlockSpec((1, TH, W_pad, TC),
                                       lambda n, hs, co: (n, hs, 0, co)),
                scratch_shapes=[
                    pltpu.VMEM(((TH + 2) * W_pad, 3 * Cin_p), jnp.bfloat16)],
            ),
            compiler_params=pltpu.CompilerParams(
                # co carries the cached-LHS dependency through scratch -> keep sequential.
                dimension_semantics=("parallel", "parallel", "arbitrary"),
                vmem_limit_bytes=vmem_limit),
        )(x, top, bot, w, bias)

    out = out[:, :H, :W, :Cout]
    return jnp.transpose(out, (0, 3, 1, 2)).astype(jnp.float32)       # back to NCHW f32


def conv_bn_relu(x_nchw, weight_oihw, gamma, beta, running_mean, running_var,
                 eps=1e-5, *, tile_h=None, tile_cout=None):
    """Conv2d(3x3, stride 1, pad 1, no bias) -> BN (running stats) -> LeakyReLU(0.01)."""
    tc_pref, th_def, vmem_limit = _device_defaults()
    H = x_nchw.shape[2]
    Cout = weight_oihw.shape[0]
    Cout_p = _round_up(Cout, _LANE)
    if tile_cout is None:
        tile_cout = tc_pref if Cout_p % tc_pref == 0 else _LANE
    assert Cout_p % tile_cout == 0
    if tile_h is None:
        tile_h = th_def
    tile_h = max(1, min(int(tile_h), _round_up(H, _SUBLANE)))
    return _forward(x_nchw, weight_oihw, gamma, beta, running_mean, running_var,
                    float(eps), int(tile_h), int(tile_cout), int(vmem_limit))


def _reference(x_nchw, weight_oihw, gamma, beta, running_mean, running_var, eps=1e-5):
    # bf16-cast inputs to match the kernel's MXU precision; f32 accumulation + epilogue.
    y = jax.lax.conv_general_dilated(
        x_nchw.astype(jnp.bfloat16), weight_oihw.astype(jnp.bfloat16),
        window_strides=(1, 1), padding=((1, 1), (1, 1)),
        dimension_numbers=("NCHW", "OIHW", "NCHW"),
        preferred_element_type=jnp.float32)
    scale = (gamma / jnp.sqrt(running_var + eps)).reshape(1, -1, 1, 1)
    bias = (beta - running_mean * gamma / jnp.sqrt(running_var + eps)).reshape(1, -1, 1, 1)
    y = y * scale + bias
    return jnp.where(y > 0, y, 0.01 * y)


def _run_case(key, N, Cin, Cout, H, W, **kwargs):
    k_x, k_w, k_g, k_b, k_m, k_v = jax.random.split(key, 6)
    x = jax.random.normal(k_x, (N, Cin, H, W), jnp.float32)
    weight = jax.random.normal(k_w, (Cout, Cin, 3, 3), jnp.float32) * 0.1
    gamma = 1.0 + 0.1 * jax.random.normal(k_g, (Cout,), jnp.float32)
    beta = 0.1 * jax.random.normal(k_b, (Cout,), jnp.float32)
    rmean = 0.1 * jax.random.normal(k_m, (Cout,), jnp.float32)
    rvar = jnp.abs(jax.random.normal(k_v, (Cout,), jnp.float32)) + 0.5

    out = conv_bn_relu(x, weight, gamma, beta, rmean, rvar, **kwargs)
    out = jax.block_until_ready(out)
    ref = _reference(x, weight, gamma, beta, rmean, rvar)

    assert out.shape == (N, Cout, H, W)
    # bf16 MXU inputs + bf16 kernel output -> loose-ish tolerance; real bugs are O(1) off.
    ok = bool(jnp.allclose(out, ref, atol=3e-2, rtol=3e-2))
    err = float(jnp.max(jnp.abs(out - ref)))
    assert ok, f"mismatch vs reference (max abs err = {err})"


if __name__ == "__main__":
    key = jax.random.PRNGKey(0)
    k1, k2, k3, k4 = jax.random.split(key, 4)

    # Stem-layer (small-Cin single-matmul) path, aligned spatial dims.
    _run_case(k1, N=2, Cin=4, Cout=8, H=16, W=16)
    # Stem-layer path with unaligned H/W (exercises spatial padding & output slicing).
    _run_case(k2, N=1, Cin=3, Cout=5, H=13, W=10)
    # General path (Cin padded to 128): halo strips + kw-fused im2col + LHS scratch.
    _run_case(k3, N=1, Cin=32, Cout=8, H=16, W=16)
    # General path with n_co > 1 (forces tile_cout=128) to exercise the per-strip LHS
    # cache being reused across Cout blocks (pl.when(co == 0) path).
    _run_case(k4, N=1, Cin=32, Cout=160, H=16, W=16, tile_cout=128)

    print("KERNEL_OK")
</pallas_src>

<mosaic_0001>
module attributes {stable_mosaic.version = 11 : i64} {
  func.func @_conv_kernel_small_cin(%arg0: i32, %arg1: i32, %arg2: i32, %arg3: memref<1x8x16x36xbf16, #tpu.memory_space<vmem>>, %arg4: memref<36x128xbf16, #tpu.memory_space<vmem>>, %arg5: memref<1x128xf32, #tpu.memory_space<vmem>>, %arg6: memref<1x8x16x128xbf16, #tpu.memory_space<vmem>>) attributes {dimension_semantics = [#tpu.dimension_semantics<parallel>, #tpu.dimension_semantics<parallel>, #tpu.dimension_semantics<parallel>], iteration_bounds = array<i64: 2, 2, 1>, scalar_prefetch = 0 : i64, scratch_operands = 0 : i64, tpu.core_type = #tpu.core_type<tc>, window_params = [{transform_indices = @transform_0, window_bounds = array<i64: 1, 8, 16, 36>}, {transform_indices = @transform_1, window_bounds = array<i64: 36, 128>}, {transform_indices = @transform_2, window_bounds = array<i64: 1, 128>}, {transform_indices = @transform_3, window_bounds = array<i64: 1, 8, 16, 128>}]} {
    %c0 = arith.constant 0 : index
    %c0_0 = arith.constant 0 : index
    %c0_1 = arith.constant 0 : index
    %c0_2 = arith.constant 0 : index
    %0 = vector.load %arg3[%c0, %c0_0, %c0_1, %c0_2] : memref<1x8x16x36xbf16, #tpu.memory_space<vmem>>, vector<1x8x16x36xbf16>
    %1 = vector.shape_cast %0 : vector<1x8x16x36xbf16> to vector<8x16x36xbf16>
    %2 = vector.shape_cast %1 : vector<8x16x36xbf16> to vector<128x36xbf16>
    %c0_3 = arith.constant 0 : index
    %c0_4 = arith.constant 0 : index
    %3 = vector.load %arg4[%c0_3, %c0_4] : memref<36x128xbf16, #tpu.memory_space<vmem>>, vector<36x128xbf16>
    %cst = arith.constant dense<0.000000e+00> : vector<128x128xf32>
    %4 = tpu.matmul %2, %3, %cst {dimension_numbers = #tpu.dot_dimension_numbers<[1], [0], [0], [1], [0, 0, 1, 1], [], []>} : vector<128x36xbf16>, vector<36x128xbf16>, vector<128x128xf32> -> vector<128x128xf32>
    %c0_5 = arith.constant 0 : index
    %c0_6 = arith.constant 0 : index
    %5 = vector.load %arg5[%c0_5, %c0_6] : memref<1x128xf32, #tpu.memory_space<vmem>>, vector<1x128xf32>
    %6 = vector.shape_cast %5 : vector<1x128xf32> to vector<128xf32>
    %7 = vector.shape_cast %6 : vector<128xf32> to vector<1x128xf32>
    %8 = vector.broadcast %7 : vector<1x128xf32> to vector<128x128xf32>
    %9 = arith.addf %4, %8 : vector<128x128xf32>
    %cst_7 = arith.constant 0.000000e+00 : f32
    %10 = vector.broadcast %cst_7 : f32 to vector<128x128xf32>
    %11 = arith.cmpf ogt, %9, %10 : vector<128x128xf32>
    %cst_8 = arith.constant 0.00999999977 : f32
    %12 = vector.broadcast %cst_8 : f32 to vector<128x128xf32>
    %13 = arith.mulf %12, %9 : vector<128x128xf32>
    %14 = arith.select %11, %9, %13 : vector<128x128xi1>, vector<128x128xf32>
    %15 = vector.shape_cast %14 : vector<128x128xf32> to vector<8x16x128xf32>
    %16 = arith.truncf %15 : vector<8x16x128xf32> to vector<8x16x128xbf16>
    %c0_9 = arith.constant 0 : index
    %c0_10 = arith.constant 0 : index
    %c0_11 = arith.constant 0 : index
    %c0_12 = arith.constant 0 : index
    %17 = vector.load %arg6[%c0_9, %c0_10, %c0_11, %c0_12] : memref<1x8x16x128xbf16, #tpu.memory_space<vmem>>, vector<1x8x16x128xbf16>
    %18 = vector.shape_cast %17 : vector<1x8x16x128xbf16> to vector<8x16x128xbf16>
    %19 = vector.shape_cast %16 : vector<8x16x128xbf16> to vector<1x8x16x128xbf16>
    tpu.vector_store %arg6[%c0_9, %c0_10, %c0_11, %c0_12], %19 {strides = array<i32>} : memref<1x8x16x128xbf16, #tpu.memory_space<vmem>>, vector<1x8x16x128xbf16>,
    return
  }
  func.func @transform_0(%arg0: i32, %arg1: i32, %arg2: i32) -> (i32, i32, i32, i32) {
    %c0_i32 = arith.constant 0 : i32
    %c0_i32_0 = arith.constant 0 : i32
    %c0_i32_1 = arith.constant 0 : i32
    return %arg0, %arg1, %c0_i32, %c0_i32_0 : i32, i32, i32, i32
  }
  func.func @transform_1(%arg0: i32, %arg1: i32, %arg2: i32) -> (i32, i32) {
    %c0_i32 = arith.constant 0 : i32
    %c0_i32_0 = arith.constant 0 : i32
    return %c0_i32, %arg2 : i32, i32
  }
  func.func @transform_2(%arg0: i32, %arg1: i32, %arg2: i32) -> (i32, i32) {
    %c0_i32 = arith.constant 0 : i32
    %c0_i32_0 = arith.constant 0 : i32
    return %c0_i32, %arg2 : i32, i32
  }
  func.func @transform_3(%arg0: i32, %arg1: i32, %arg2: i32) -> (i32, i32, i32, i32) {
    %c0_i32 = arith.constant 0 : i32
    %c0_i32_0 = arith.constant 0 : i32
    return %arg0, %arg1, %c0_i32, %arg2 : i32, i32, i32, i32
  }
}

</mosaic_0001>

<llo_original>
// kernel: _forward.1
$region0: #{_forward.1}
  #allocation0 [shape = 'u32[]', space=smem, size = 0x4, offset = 0x4, fixed_abs, tag = 'smem constant byte address 0x4 - core index']
  #allocation1 [shape = 'u32[144,128]{1,0:T(1,128)}', space=vmem, size = 0x12000, scoped, tag = 'internal scratch']
  %s0 = inlined_call_operand.vmem [shape: bf16[2,16,16,36], index: 0, kind: input, shape index: {}]
  %s1 = inlined_call_operand.vmem [shape: bf16[36,128], index: 1, kind: input, shape index: {}]
  %s2 = inlined_call_operand.vmem [shape: f32[1,128], index: 2, kind: input, shape index: {}]
  %s3 = inlined_call_operand.vmem [shape: bf16[2,16,16,128], index: 3, kind: output, shape index: {}]
  %s4 = sld [smem:[#allocation0]]
  $region45: #{_forward.1} parent=0
    _
  %s6 = ssub.s32 1, %s4
  %s7 = scalar_select 0, %s6, %s4
  loop: start=0, step=1, limit=6
  $region2: #{_forward.1} parent=0 // loop_pre_header
    _
  $region3: #{_forward.1} parent=0 // loop_header
    %s9 = sphi 0, %s13
    %p10 = scmp.ge.s32.totalorder %s9, 6
    %s16 = sphi 0, %s35
    %s17 = sphi 0, %s31
    %s18 = sphi 0, %s27
    %s19 = sphi 0, %s16
    %s20 = sphi 0, %s17
    %s21 = sphi 0, %s18
    %s22 = sphi 0, %s19
    %s23 = sphi 0, %s20
    %s24 = sphi 0, %s21
    %s40 = sphi 0, %s42
    %s43 = sphi 0, %s40
    %s44 = sphi 0, %s43
    %s60 = sphi 0, %s44
    %s66 = sphi 0, %s68
    %s69 = sphi 0, %s66
    %s70 = sphi 0, %s69
    %s86 = sphi 0, %s70
    %s92 = sphi 0, %s94
    %s95 = sphi 0, %s92
    %s96 = sphi 0, %s95
    %s112 = sphi 0, %s96
    %s122 = sphi 0, %s124
    %s125 = sphi 0, %s122
    %s126 = sphi 0, %s125
    %s142 = sphi 0, %s126
  $region4: #{_forward.1} parent=0 // loop_header_branch
    %12 = sbr.rel (%p10) target = $region8
  $region5: #{_forward.1} parent=0 // loop_body
    %s14 = ssub.s32 %s9, 1
    %s15 = ssub.s32 %s9, 2
    %s25 = sadd.s32 1, %s18
    %p26 = scmp.ge.s32.totalorder %s25, 1
    %s27 = scalar_select %p26, 0, %s25
    %s28 = sadd.s32 1, %s17
    %s29 = scalar_select %p26, %s28, %s17
    %p30 = scmp.ge.s32.totalorder %s29, 2
    %s31 = scalar_select %p30, 0, %s29
    %s32 = sadd.s32 1, %s16
    %s33 = scalar_select %p30, %s32, %s16
    %p34 = scmp.ge.s32.totalorder %s33, 2
    %s35 = scalar_select %p34, 0, %s33
    %s36 = ssub.s32 %s16, %s35
    %s37 = ssub.s32 %s17, %s31
    %s38 = sor.u32 %s36, %s37
    %p39 = scmp.eq.s32.totalorder %s38, 0
    %s41 = sadd.s32 %s40, 1
    %s42 = scalar_select %p39, %s40, %s41
    %p45 = pneg %p39
    %p46 = scmp.eq.s32.totalorder %s9, 3
    %p47 = por %p45, %p46
    %p48 = scmp.ne.s32.totalorder %s40, %s43
    %p49 = scmp.eq.s32.totalorder %s9, 0
    %p50 = por %p48, %p49
    %p51 = scmp.ne.s32.totalorder %s40, %s43
    %p52 = scmp.eq.s32.totalorder %s14, 3
    %p53 = por %p51, %p52
    %p54 = scmp.ne.s32.totalorder %s43, %s44
    %p55 = scmp.eq.s32.totalorder %s14, 0
    %p56 = por %p54, %p55
    %p57 = scmp.ne.s32.totalorder %s43, %s44
    %p58 = scmp.eq.s32.totalorder %s15, 3
    %p59 = por %p57, %p58
    %p61 = scmp.ne.s32.totalorder %s44, %s60
    %p62 = scmp.eq.s32.totalorder %s15, 0
    %p63 = por %p61, %p62
    %s64 = ssub.s32 %s18, %s27
    %p65 = scmp.eq.s32.totalorder %s64, 0
    %s67 = sadd.s32 %s66, 1
    %s68 = scalar_select %p65, %s66, %s67
    %p71 = pneg %p65
    %p72 = scmp.eq.s32.totalorder %s9, 3
    %p73 = por %p71, %p72
    %p74 = scmp.ne.s32.totalorder %s66, %s69
    %p75 = scmp.eq.s32.totalorder %s9, 0
    %p76 = por %p74, %p75
    %p77 = scmp.ne.s32.totalorder %s66, %s69
    %p78 = scmp.eq.s32.totalorder %s14, 3
    %p79 = por %p77, %p78
    %p80 = scmp.ne.s32.totalorder %s69, %s70
    %p81 = scmp.eq.s32.totalorder %s14, 0
    %p82 = por %p80, %p81
    %p83 = scmp.ne.s32.totalorder %s69, %s70
    %p84 = scmp.eq.s32.totalorder %s15, 3
    %p85 = por %p83, %p84
    %p87 = scmp.ne.s32.totalorder %s70, %s86
    %p88 = scmp.eq.s32.totalorder %s15, 0
    %p89 = por %p87, %p88
    %s90 = ssub.s32 %s18, %s27
    %p91 = scmp.eq.s32.totalorder %s90, 0
    %s93 = sadd.s32 %s92, 1
    %s94 = scalar_select %p91, %s92, %s93
    %p97 = pneg %p91
    %p98 = scmp.eq.s32.totalorder %s9, 3
    %p99 = por %p97, %p98
    %p100 = scmp.ne.s32.totalorder %s92, %s95
    %p101 = scmp.eq.s32.totalorder %s9, 0
    %p102 = por %p100, %p101
    %p103 = scmp.ne.s32.totalorder %s92, %s95
    %p104 = scmp.eq.s32.totalorder %s14, 3
    %p105 = por %p103, %p104
    %p106 = scmp.ne.s32.totalorder %s95, %s96
    %p107 = scmp.eq.s32.totalorder %s14, 0
    %p108 = por %p106, %p107
    %p109 = scmp.ne.s32.totalorder %s95, %s96
    %p110 = scmp.eq.s32.totalorder %s15, 3
    %p111 = por %p109, %p110
    %p113 = scmp.ne.s32.totalorder %s96, %s112
    %p114 = scmp.eq.s32.totalorder %s15, 0
    %p115 = por %p113, %p114
    %s116 = ssub.s32 %s16, %s35
    %s117 = ssub.s32 %s17, %s31
    %s118 = sor.u32 %s116, %s117
    %s119 = ssub.s32 %s18, %s27
    %s120 = sor.u32 %s118, %s119
    %p121 = scmp.eq.s32.totalorder %s120, 0
    %s123 = sadd.s32 %s122, 1
    %s124 = scalar_select %p121, %s122, %s123
    %p127 = pneg %p121
    %p128 = scmp.eq.s32.totalorder %s9, 3
    %p129 = por %p127, %p128
    %p130 = scmp.ne.s32.totalorder %s122, %s125
    %p131 = scmp.eq.s32.totalorder %s9, 0
    %p132 = por %p130, %p131
    %p133 = scmp.ne.s32.totalorder %s122, %s125
    %p134 = scmp.eq.s32.totalorder %s14, 3
    %p135 = por %p133, %p134
    %p136 = scmp.ne.s32.totalorder %s125, %s126
    %p137 = scmp.eq.s32.totalorder %s14, 0
    %p138 = por %p136, %p137
    %p139 = scmp.ne.s32.totalorder %s125, %s126
    %p140 = scmp.eq.s32.totalorder %s15, 3
    %p141 = por %p139, %p140
    %p143 = scmp.ne.s32.totalorder %s126, %s142
    %p144 = scmp.eq.s32.totalorder %s15, 0
    %p145 = por %p143, %p144
    %p146 = scmp.le.s32.totalorder 1, %s9
    %p147 = scmp.lt.s32.totalorder %s9, 5
    %p148 = pnand %p146, %p147
    %p149 = pneg %p148
    // Predicated region
    $region9: #{_forward.1} parent=5 // pred_check
      _
    $region10: #{_forward.1} parent=5 // pred_check_branch
      %151 = sbr.rel (%p148) target = $region12
    $region11: #{_forward.1} parent=5 // pred_region
      %s152 = ssub.s32 %s9, 1
      // Predicated region
      $region13: #{_forward.1} parent=11 // pred_check
        %p153 = pneg %p82
      $region14: #{_forward.1} parent=11 // pred_check_branch
        %155 = sbr.rel (%p153) target = $region16
      $region15: #{_forward.1} parent=11 // pred_region
        %p156 = scmp.lt.s32.totalorder %s21, 0
        %s157 = scalar_select %p156, %s21, 0
        %s158 = smul.addr %s157, 4
        %s159 = scalar_lea.vmem %s1, %s158
      $region16: #{_forward.1} parent=11 // pred_fallthru
        _
      // Predicated region
      $region17: #{_forward.1} parent=11 // pred_check
        %p160 = pneg %p108
      $region18: #{_forward.1} parent=11 // pred_check_branch
        %162 = sbr.rel (%p160) target = $region20
      $region19: #{_forward.1} parent=11 // pred_region
        %p163 = scmp.lt.s32.totalorder %s21, 0
        %s164 = scalar_select %p163, %s21, 0
        %s165 = scalar_lea.vmem %s2, %s164
      $region20: #{_forward.1} parent=11 // pred_fallthru
        _
    $region12: #{_forward.1} parent=5 // pred_fallthru
      _
    %p166 = scmp.lt.s32.totalorder %s9, 4
    // Predicated region
    $region21: #{_forward.1} parent=5 // pred_check
      %p167 = pneg %p166
    $region22: #{_forward.1} parent=5 // pred_check_branch
      %169 = sbr.rel (%p167) target = $region24
    $region23: #{_forward.1} parent=5 // pred_region
      // Predicated region
      $region25: #{_forward.1} parent=23 // pred_check
        %p170 = pneg %p50
      $region26: #{_forward.1} parent=23 // pred_check_branch
        %172 = sbr.rel (%p170) target = $region28
      $region27: #{_forward.1} parent=23 // pred_region
        %s173 = smul.u32 8, %s17
        %p174 = scmp.lt.s32.totalorder %s16, 1
        %s175 = scalar_select %p174, %s16, 1
        %p176 = scmp.lt.s32.totalorder %s173, 15
        %s177 = scalar_select %p176, %s173, 15
        %s178 = smul.addr %s177, 2
        %s179 = smul.addr %s175, 32
        %s180 = sadd.s32 %s178, %s179
        %s181 = smul.addr %s180, 4
        %s182 = scalar_lea.vmem %s0, %s181
        %s183 = smul.u32 8, %s17
      $region28: #{_forward.1} parent=23 // pred_fallthru
        _
    $region24: #{_forward.1} parent=5 // pred_fallthru
      _
    %p184 = scmp.le.s32.totalorder 1, %s9
    %p185 = scmp.lt.s32.totalorder %s9, 5
    %p186 = pnand %p184, %p185
    %p187 = pneg %p186
    // Predicated region
    $region29: #{_forward.1} parent=5 // pred_check
      _
    $region30: #{_forward.1} parent=5 // pred_check_branch
      %189 = sbr.rel (%p186) target = $region32
    $region31: #{_forward.1} parent=5 // pred_region
      %s190 = ssub.s32 %s9, 1
      %s191 = smul.u32 8, %s20
      %p192 = scmp.lt.s32.totalorder %s19, 1
      %s193 = scalar_select %p192, %s19, 1
      %p194 = scmp.lt.s32.totalorder %s191, 15
      %s195 = scalar_select %p194, %s191, 15
      %s196 = smul.addr %s195, 2
      %s197 = smul.addr %s193, 32
      %s198 = sadd.s32 %s196, %s197
      %s199 = smul.addr %s198, 4
      %s200 = scalar_lea.vmem %s0, %s199
      %p201 = pneg %p56
      %p202 = pneg %p53
      %p203 = scmp.lt.s32.totalorder %s21, 0
      %s204 = scalar_select %p203, %s21, 0
      %s205 = smul.addr %s204, 4
      %s206 = scalar_lea.vmem %s1, %s205
      %p207 = pneg %p82
      %p208 = pneg %p79
      %p209 = scmp.lt.s32.totalorder %s21, 0
      %s210 = scalar_select %p209, %s21, 0
      %s211 = scalar_lea.vmem %s2, %s210
      %p212 = pneg %p108
      %p213 = pneg %p105
      %p214 = pneg %p138
      %p215 = pneg %p135
      %s216 = smul.u32 8, %s20
      %p217 = scmp.lt.s32.totalorder %s19, 1
      %s218 = scalar_select %p217, %s19, 1
      %p219 = scmp.lt.s32.totalorder %s216, 15
      %s220 = scalar_select %p219, %s216, 15
      %p221 = scmp.lt.s32.totalorder %s21, 0
      %s222 = scalar_select %p221, %s21, 0
      %s223 = smul.addr %s220, 2
      %s224 = sadd.s32 %s222, %s223
      %s225 = smul.addr %s218, 32
      %s226 = sadd.s32 %s224, %s225
      %s227 = smul.addr %s226, 4
      %s228 = scalar_lea.vmem %s3, %s227
      %s229 = smul.u32 8, %s20
      %p230 = scmp.lt.s32.totalorder %s19, 1
      %s231 = scalar_select %p230, %s19, 1
      %p232 = scmp.lt.s32.totalorder %s229, 15
      %s233 = scalar_select %p232, %s229, 15
      %s234 = smul.addr %s233, 2
      %s235 = smul.addr %s231, 32
      %s236 = sadd.s32 %s234, %s235
      %s237 = smul.addr %s236, 4
      %s238 = scalar_lea.vmem %s0, %s237
      %s239 = smul.u32 8, %s20
      %p240 = scmp.lt.s32.totalorder %s21, 0
      %s241 = scalar_select %p240, %s21, 0
      %s242 = smul.addr %s241, 4
      %s243 = scalar_lea.vmem %s1, %s242
      %p244 = scmp.lt.s32.totalorder %s21, 0
      %s245 = scalar_select %p244, %s21, 0
      %s246 = scalar_lea.vmem %s2, %s245
      %s247 = smul.u32 8, %s20
      %p248 = scmp.lt.s32.totalorder %s19, 1
      %s249 = scalar_select %p248, %s19, 1
      %p250 = scmp.lt.s32.totalorder %s247, 15
      %s251 = scalar_select %p250, %s247, 15
      %p252 = scmp.lt.s32.totalorder %s21, 0
      %s253 = scalar_select %p252, %s21, 0
      %s254 = smul.addr %s251, 2
      %s255 = sadd.s32 %s253, %s254
      %s256 = smul.addr %s249, 32
      %s257 = sadd.s32 %s255, %s256
      %s258 = smul.addr %s257, 4
      %s259 = scalar_lea.vmem %s3, %s258
      %s260 = smul.u32 8, %s20
      %v262 = vld [vmem:[%s238] sm:$0xf]
      %v263 = vld [vmem:[%s238 + $0x4] sm:$0xf]
      %v264 = vld [vmem:[%s238 + $0x8] sm:$0xf]
      %v265 = vld [vmem:[%s238 + $0xc] sm:$0xf]
      %v266 = vld [vmem:[%s238 + $0x10] sm:$0xf]
      %v267 = vld [vmem:[%s238 + $0x14] sm:$0xf]
      %v268 = vld [vmem:[%s238 + $0x18] sm:$0xf]
      %v269 = vld [vmem:[%s238 + $0x1c] sm:$0xf]
      %v270 = vld [vmem:[%s238 + $0x20] sm:$0xf]
      %v271 = vld [vmem:[%s238 + $0x24] sm:$0xf]
      %v272 = vld [vmem:[%s238 + $0x28] sm:$0xf]
      %v273 = vld [vmem:[%s238 + $0x2c] sm:$0xf]
      %v274 = vld [vmem:[%s238 + $0x30] sm:$0xf]
      %v275 = vld [vmem:[%s238 + $0x34] sm:$0xf]
      %v276 = vld [vmem:[%s238 + $0x38] sm:$0xf]
      %v277 = vld [vmem:[%s238 + $0x3c] sm:$0xf]
      %v278 = vld [vmem:[%s243] sm:$0xf]
      %v279 = vld [vmem:[%s243 + $0x4] sm:$0xf]
      %v280 = vld [vmem:[%s243 + $0x8] sm:$0xf]
      %v281 = vld [vmem:[%s243 + $0xc] sm:$0xf]
      %v282 = vld [vmem:[%s243 + $0x10] sm:$0x3]
      %v283 = vld [vmem:[%s246] sm:$0x1]
      %v285 = vlaneseq
      %v286 = vshrl.u32 %v285, 7
      %v287 = vsub.s32 0, %v286
      %v288 = vrot.slane %v283, %v287
      %v306 = vunpack.c.l.b16 %v262
      %v307 = vunpack.c.l.b16 %v263
      %v308 = vunpack.c.l.b16 %v264
      %v309 = vunpack.c.l.b16 %v265
      %v310 = vunpack.c.l.b16 %v266
      %v311 = vunpack.c.l.b16 %v267
      %v312 = vunpack.c.l.b16 %v268
      %v313 = vunpack.c.l.b16 %v269
      %v314 = vunpack.c.l.b16 %v270
      %v315 = vunpack.c.l.b16 %v271
      %v316 = vunpack.c.l.b16 %v272
      %v317 = vunpack.c.l.b16 %v273
      %v318 = vunpack.c.l.b16 %v274
      %v319 = vunpack.c.l.b16 %v275
      %v320 = vunpack.c.l.b16 %v276
      %v321 = vunpack.c.l.b16 %v277
      %v322 = vpack.c.b16 %v307, %v306
      %v323 = vpack.c.b16 %v309, %v308
      %v324 = vpack.c.b16 %v311, %v310
      %v325 = vpack.c.b16 %v313, %v312
      %v326 = vpack.c.b16 %v315, %v314
      %v327 = vpack.c.b16 %v317, %v316
      %v328 = vpack.c.b16 %v319, %v318
      %v329 = vpack.c.b16 %v321, %v320
      %v335 = vunpack.c.l.b16 %v278
      %v336 = vunpack.c.l.b16 %v279
      %v337 = vunpack.c.l.b16 %v280
      %v338 = vunpack.c.l.b16 %v281
      %v339 = vunpack.c.l.b16 %v282
      %v340 = vpack.c.b16 %v336, %v335
      %v341 = vpack.c.b16 %v338, %v337
      %v342 = vpack.c.b16 %v339, %v339
      %vm345 = vcmask 293888
      %v347 = vsel %vm345, %v322, 0
      %v350 = vsel %vm345, %v323, 0
      %v353 = vsel %vm345, %v324, 0
      %v356 = vsel %vm345, %v325, 0
      %v359 = vsel %vm345, %v326, 0
      %v362 = vsel %vm345, %v327, 0
      %v365 = vsel %vm345, %v328, 0
      %v368 = vsel %vm345, %v329, 0
      %vm370 = vcmask 1041408
      %v372 = vsel %vm370, %v342, 0
      %374 = vmatprep.subr.bf16.mxu0 0
      %375 = vmatpush1.bf16.msra.mxu0 0
      %376 = vmatprep.subr.bf16.mxu0 0
      %377 = vmatpush1.bf16.msra.mxu0 0
      %378 = vmatprep.subr.bf16.mxu0 0
      %379 = vmatpush1.bf16.msra.mxu0 0
      %380 = vmatprep.subr.bf16.mxu0 0
      %381 = vmatpush1.bf16.msra.mxu0 0
      %382 = vmatprep.subr.bf16.mxu0 0
      %383 = vmatpush1.bf16.msra.mxu0 0
      %384 = vmatprep.subr.bf16.mxu0 0
      %385 = vmatpush1.bf16.msra.mxu0 %v372
      %386 = vmatprep.subr.bf16.mxu0 0
      %387 = vmatpush1.bf16.msra.mxu0 %v341
      %388 = vmatprep.subr.bf16.mxu0 0
      %389 = vmatpush1.bf16.msra.mxu0 %v340
      %390 = vmatprep.subr.bf16.mxu0 0
      %391 = vmatpush2.bf16.msra.mxu0 0
      %392 = vmatprep.subr.bf16.mxu0 0
      %393 = vmatpush2.bf16.msra.mxu0 0
      %394 = vmatprep.subr.bf16.mxu0 0
      %395 = vmatpush2.bf16.msra.mxu0 0
      %396 = vmatprep.subr.bf16.mxu0 0
      %397 = vmatpush2.bf16.msra.mxu0 0
      %398 = vmatprep.subr.bf16.mxu0 0
      %399 = vmatpush2.bf16.msra.mxu0 0
      %400 = vmatprep.subr.bf16.mxu0 0
      %401 = vmatpush2.bf16.msra.mxu0 0
      %402 = vmatprep.subr.bf16.mxu0 0
      %403 = vmatpush2.bf16.msra.mxu0 0
      %404 = vmatprep.subr.bf16.mxu0 0
      %405 = vmatpush2.bf16.msra.mxu0 0
      %406 = vmatprep.mubr.bf16.mxu0 0
      %407 = vmatmul.mubr.bf16.gmra.mxu0 %v347
      %v408 = vpop.f32.mrf.mxu0
      %v409 = vadd.f32 %v288, %v408
      %v410 = vpop.f32.mrf.mxu0
      %v411 = vpop.f32.mrf.mxu0
      %v412 = vadd.f32 %v288, %v411
      %v413 = vpop.f32.mrf.mxu0
      %414 = vmatprep.mubr.bf16.mxu0 0
      %415 = vmatmul.mubr.bf16.gmra.mxu0 %v350
      %v416 = vpop.f32.mrf.mxu0
      %v417 = vadd.f32 %v288, %v416
      %v418 = vpop.f32.mrf.mxu0
      %v419 = vpop.f32.mrf.mxu0
      %v420 = vadd.f32 %v288, %v419
      %v421 = vpop.f32.mrf.mxu0
      %422 = vmatprep.mubr.bf16.mxu0 0
      %423 = vmatmul.mubr.bf16.gmra.mxu0 %v353
      %v424 = vpop.f32.mrf.mxu0
      %v425 = vadd.f32 %v288, %v424
      %v426 = vpop.f32.mrf.mxu0
      %v427 = vpop.f32.mrf.mxu0
      %v428 = vadd.f32 %v288, %v427
      %v429 = vpop.f32.mrf.mxu0
      %430 = vmatprep.mubr.bf16.mxu0 0
      %431 = vmatmul.mubr.bf16.gmra.mxu0 %v356
      %v432 = vpop.f32.mrf.mxu0
      %v433 = vadd.f32 %v288, %v432
      %v434 = vpop.f32.mrf.mxu0
      %v435 = vpop.f32.mrf.mxu0
      %v436 = vadd.f32 %v288, %v435
      %v437 = vpop.f32.mrf.mxu0
      %438 = vmatprep.mubr.bf16.mxu0 0
      %439 = vmatmul.mubr.bf16.gmra.mxu0 %v359
      %v440 = vpop.f32.mrf.mxu0
      %v441 = vadd.f32 %v288, %v440
      %v442 = vpop.f32.mrf.mxu0
      %v443 = vpop.f32.mrf.mxu0
      %v444 = vadd.f32 %v288, %v443
      %v445 = vpop.f32.mrf.mxu0
      %446 = vmatprep.mubr.bf16.mxu0 0
      %447 = vmatmul.mubr.bf16.gmra.mxu0 %v362
      %v448 = vpop.f32.mrf.mxu0
      %v449 = vadd.f32 %v288, %v448
      %v450 = vpop.f32.mrf.mxu0
      %v451 = vpop.f32.mrf.mxu0
      %v452 = vadd.f32 %v288, %v451
      %v453 = vpop.f32.mrf.mxu0
      %454 = vmatprep.mubr.bf16.mxu0 0
      %455 = vmatmul.mubr.bf16.gmra.mxu0 %v365
      %v456 = vpop.f32.mrf.mxu0
      %v457 = vadd.f32 %v288, %v456
      %v458 = vpop.f32.mrf.mxu0
      %v459 = vpop.f32.mrf.mxu0
      %v460 = vadd.f32 %v288, %v459
      %v461 = vpop.f32.mrf.mxu0
      %462 = vmatprep.mubr.bf16.mxu0 0
      %463 = vmatmul.mubr.bf16.gmra.mxu0 %v368
      %v464 = vpop.f32.mrf.mxu0
      %v465 = vadd.f32 %v288, %v464
      %v466 = vpop.f32.mrf.mxu0
      %v467 = vpop.f32.mrf.mxu0
      %v468 = vadd.f32 %v288, %v467
      %v469 = vpop.f32.mrf.mxu0
      %470 = vdwg.mxu0
      %vm471 = vcmp.gt.f32.partialorder %v409, 0.0
      %vm472 = vcmp.gt.f32.partialorder %v412, 0.0
      %vm473 = vcmp.gt.f32.partialorder %v417, 0.0
      %vm474 = vcmp.gt.f32.partialorder %v420, 0.0
      %vm475 = vcmp.gt.f32.partialorder %v425, 0.0
      %vm476 = vcmp.gt.f32.partialorder %v428, 0.0
      %vm477 = vcmp.gt.f32.partialorder %v433, 0.0
      %vm478 = vcmp.gt.f32.partialorder %v436, 0.0
      %vm479 = vcmp.gt.f32.partialorder %v441, 0.0
      %vm480 = vcmp.gt.f32.partialorder %v444, 0.0
      %vm481 = vcmp.gt.f32.partialorder %v449, 0.0
      %vm482 = vcmp.gt.f32.partialorder %v452, 0.0
      %vm483 = vcmp.gt.f32.partialorder %v457, 0.0
      %vm484 = vcmp.gt.f32.partialorder %v460, 0.0
      %vm485 = vcmp.gt.f32.partialorder %v465, 0.0
      %vm486 = vcmp.gt.f32.partialorder %v468, 0.0
      %v487 = vmul.f32 %v409, 0.01
      %v488 = vmul.f32 %v412, 0.01
      %v489 = vmul.f32 %v417, 0.01
      %v490 = vmul.f32 %v420, 0.01
      %v491 = vmul.f32 %v425, 0.01
      %v492 = vmul.f32 %v428, 0.01
      %v493 = vmul.f32 %v433, 0.01
      %v494 = vmul.f32 %v436, 0.01
      %v495 = vmul.f32 %v441, 0.01
      %v496 = vmul.f32 %v444, 0.01
      %v497 = vmul.f32 %v449, 0.01
      %v498 = vmul.f32 %v452, 0.01
      %v499 = vmul.f32 %v457, 0.01
      %v500 = vmul.f32 %v460, 0.01
      %v501 = vmul.f32 %v465, 0.01
      %v502 = vmul.f32 %v468, 0.01
      %v503 = vsel %vm471, %v409, %v487
      %v504 = vsel %vm472, %v412, %v488
      %v505 = vsel %vm473, %v417, %v489
      %v506 = vsel %vm474, %v420, %v490
      %v507 = vsel %vm475, %v425, %v491
      %v508 = vsel %vm476, %v428, %v492
      %v509 = vsel %vm477, %v433, %v493
      %v510 = vsel %vm478, %v436, %v494
      %v511 = vsel %vm479, %v441, %v495
      %v512 = vsel %vm480, %v444, %v496
      %v513 = vsel %vm481, %v449, %v497
      %v514 = vsel %vm482, %v452, %v498
      %v515 = vsel %vm483, %v457, %v499
      %v516 = vsel %vm484, %v460, %v500
      %v517 = vsel %vm485, %v465, %v501
      %v518 = vsel %vm486, %v468, %v502
      %v519 = vpack.c.bf16 %v504, %v503
      %v520 = vpack.c.bf16 %v506, %v505
      %v521 = vpack.c.bf16 %v508, %v507
      %v522 = vpack.c.bf16 %v510, %v509
      %v523 = vpack.c.bf16 %v512, %v511
      %v524 = vpack.c.bf16 %v514, %v513
      %v525 = vpack.c.bf16 %v516, %v515
      %v526 = vpack.c.bf16 %v518, %v517
      %v535 = vunpack.c.l.b16 %v519
      %v536 = vunpack.c.h.b16 %v519
      %v537 = vunpack.c.l.b16 %v520
      %v538 = vunpack.c.h.b16 %v520
      %v539 = vunpack.c.l.b16 %v521
      %v540 = vunpack.c.h.b16 %v521
      %v541 = vunpack.c.l.b16 %v522
      %v542 = vunpack.c.h.b16 %v522
      %v543 = vunpack.c.l.b16 %v523
      %v544 = vunpack.c.h.b16 %v523
      %v545 = vunpack.c.l.b16 %v524
      %v546 = vunpack.c.h.b16 %v524
      %v547 = vunpack.c.l.b16 %v525
      %v548 = vunpack.c.h.b16 %v525
      %v549 = vunpack.c.l.b16 %v526
      %v550 = vunpack.c.h.b16 %v526
      %v551 = vpack.c.b16 %v535, %v535
      %v552 = vpack.c.b16 %v536, %v536
      %v553 = vpack.c.b16 %v537, %v537
      %v554 = vpack.c.b16 %v538, %v538
      %v555 = vpack.c.b16 %v539, %v539
      %v556 = vpack.c.b16 %v540, %v540
      %v557 = vpack.c.b16 %v541, %v541
      %v558 = vpack.c.b16 %v542, %v542
      %v559 = vpack.c.b16 %v543, %v543
      %v560 = vpack.c.b16 %v544, %v544
      %v561 = vpack.c.b16 %v545, %v545
      %v562 = vpack.c.b16 %v546, %v546
      %v563 = vpack.c.b16 %v547, %v547
      %v564 = vpack.c.b16 %v548, %v548
      %v565 = vpack.c.b16 %v549, %v549
      %v566 = vpack.c.b16 %v550, %v550
      %583 = vst [vmem:[%s259] sm:$0xf] %v551
      %584 = vst [vmem:[%s259 + $0x4] sm:$0xf] %v552
      %585 = vst [vmem:[%s259 + $0x8] sm:$0xf] %v553
      %586 = vst [vmem:[%s259 + $0xc] sm:$0xf] %v554
      %587 = vst [vmem:[%s259 + $0x10] sm:$0xf] %v555
      %588 = vst [vmem:[%s259 + $0x14] sm:$0xf] %v556
      %589 = vst [vmem:[%s259 + $0x18] sm:$0xf] %v557
      %590 = vst [vmem:[%s259 + $0x1c] sm:$0xf] %v558
      %591 = vst [vmem:[%s259 + $0x20] sm:$0xf] %v559
      %592 = vst [vmem:[%s259 + $0x24] sm:$0xf] %v560
      %593 = vst [vmem:[%s259 + $0x28] sm:$0xf] %v561
      %594 = vst [vmem:[%s259 + $0x2c] sm:$0xf] %v562
      %595 = vst [vmem:[%s259 + $0x30] sm:$0xf] %v563
      %596 = vst [vmem:[%s259 + $0x34] sm:$0xf] %v564
      %597 = vst [vmem:[%s259 + $0x38] sm:$0xf] %v565
      %598 = vst [vmem:[%s259 + $0x3c] sm:$0xf] %v566
      %s599 = smul.u32 8, %s20
      %p600 = scmp.lt.s32.totalorder %s19, 1
      %s601 = scalar_select %p600, %s19, 1
      %p602 = scmp.lt.s32.totalorder %s599, 15
      %s603 = scalar_select %p602, %s599, 15
      %p604 = scmp.lt.s32.totalorder %s21, 0
      %s605 = scalar_select %p604, %s21, 0
      %s606 = smul.addr %s603, 2
      %s607 = sadd.s32 %s605, %s606
      %s608 = smul.addr %s601, 32
      %s609 = sadd.s32 %s607, %s608
      %s610 = smul.addr %s609, 4
      %s611 = scalar_lea.vmem %s3, %s610
      // Predicated region
      $region33: #{_forward.1} parent=31 // pred_check
        %p612 = pneg %p135
      $region34: #{_forward.1} parent=31 // pred_check_branch
        %614 = sbr.rel (%p612) target = $region36
      $region35: #{_forward.1} parent=31 // pred_region
        %s615 = smul.u32 8, %s20
      $region36: #{_forward.1} parent=31 // pred_fallthru
        _
    $region32: #{_forward.1} parent=5 // pred_fallthru
      _
    %p616 = scmp.le.s32.totalorder 2, %s9
    // Predicated region
    $region37: #{_forward.1} parent=5 // pred_check
      %p617 = pneg %p616
    $region38: #{_forward.1} parent=5 // pred_check_branch
      %619 = sbr.rel (%p617) target = $region40
    $region39: #{_forward.1} parent=5 // pred_region
      %s620 = ssub.s32 %s9, 2
      // Predicated region
      $region41: #{_forward.1} parent=39 // pred_check
        %p621 = pneg %p141
      $region42: #{_forward.1} parent=39 // pred_check_branch
        %623 = sbr.rel (%p621) target = $region44
      $region43: #{_forward.1} parent=39 // pred_region
        %s624 = smul.u32 8, %s23
        %p625 = scmp.lt.s32.totalorder %s22, 1
        %s626 = scalar_select %p625, %s22, 1
        %p627 = scmp.lt.s32.totalorder %s624, 15
        %s628 = scalar_select %p627, %s624, 15
        %p629 = scmp.lt.s32.totalorder %s24, 0
        %s630 = scalar_select %p629, %s24, 0
        %s631 = smul.addr %s628, 2
        %s632 = sadd.s32 %s630, %s631
        %s633 = smul.addr %s626, 32
        %s634 = sadd.s32 %s632, %s633
        %s635 = smul.addr %s634, 4
        %s636 = scalar_lea.vmem %s3, %s635
      $region44: #{_forward.1} parent=39 // pred_fallthru
        _
    $region40: #{_forward.1} parent=5 // pred_fallthru
      _
  $region6: #{_forward.1} parent=0 // loop_footer
    %s13 = sadd.s32 1, %s9
  $region7: #{_forward.1} parent=0 // loop_footer_branch
    %8 = sbr.rel target = $region3
  $region8: #{_forward.1} parent=0 // loop_exit
    _

</llo_original>
